<compile_context>
chip_gen: v5e
topology: v5e:2x2
jax: 0.10.0
libtpu: 0.0.40
codegen_flags: <defaults>
</compile_context>

<pallas_src>
import jax
import jax.numpy as jnp
from jax import lax
from jax.experimental import pallas as pl
from jax.experimental.pallas import tpu as pltpu


def lstm_model_kernel(x_ref,     # (T*Bp, D)  bf16, time-major padded rows
                      wih_ref,   # (D, 4D)    bf16, fused W_ih^T, gate order (i,f,o,g)
                      whh_ref,   # (D, 4D)    bf16, fused W_hh^T, gate order (i,f,o,g)
                      b_ref,     # (1, 4D)    f32, fused (b_ih + b_hh), same gate order
                      wfc_ref,   # (1, D)     f32, fc.weight as a row
                      bfc_ref,   # (1, 1)     f32, fc.bias
                      out_ref):  # (Bp, 1)    f32, sigmoid(fc(h_T)) (padded rows ignored)
    TBp, D = x_ref.shape
    Bp = out_ref.shape[0]
    T = TBp // Bp

    # ---- Hoisted, fused input projection (off the serial critical path). ----
    # One (T*Bp, D) x (D, 4D) bf16 MXU matmul + a single bias add; f32 result.
    px = jnp.dot(x_ref[...], wih_ref[...],
                 preferred_element_type=jnp.float32) + b_ref[...]     # (T*Bp, 4D) f32

    # Recurrent fused weight loaded once; stays in 4 fully-packed vregs.
    whh = whh_ref[...]                                                # (D, 4D) bf16

    h = jnp.zeros((Bp, D), jnp.float32)
    c = jnp.zeros((Bp, D), jnp.float32)

    # ---- Fully-unrolled recurrence; h/c live in vregs for the whole loop. ----
    for t in range(T):
        r0 = t * Bp  # static, sublane-tile-aligned (Bp == 8) slice into px
        gates = px[r0:r0 + Bp, :] + jnp.dot(
            h.astype(jnp.bfloat16), whh, preferred_element_type=jnp.float32)  # (Bp, 4D)

        # Gate order (i, f, o, g): sigmoid over lanes [0:3D], tanh over [3D:4D].
        sig = jax.nn.sigmoid(gates[:, :3 * D])
        g_t = jnp.tanh(gates[:, 3 * D:])
        i_t = sig[:, 0 * D:1 * D]
        f_t = sig[:, 1 * D:2 * D]
        o_t = sig[:, 2 * D:3 * D]

        c = f_t * c + i_t * g_t
        h = o_t * jnp.tanh(c)

    # ---- fc(last hidden state) + sigmoid, on the VPU/XLU (no tail MXU op). ----
    logits = jnp.sum(h * wfc_ref[...], axis=-1, keepdims=True) + bfc_ref[...]  # (Bp, 1)
    out_ref[...] = jax.nn.sigmoid(logits)


def lstm_model_forward(x_btd, w_ih, w_hh, b_ih, b_hh, w_fc, b_fc):
    """x_btd: (B, T, D) float32; params in PyTorch shapes:
       w_ih (4D, D), w_hh (4D, D), b_ih (4D,), b_hh (4D,), w_fc (1, D), b_fc (1,)."""
    B, T, D = x_btd.shape
    Bp = max(8, ((B + 7) // 8) * 8)          # pad batch to a full f32 sublane tile
    order = jnp.array([0, 1, 3, 2])          # PyTorch (i, f, g, o) -> packed (i, f, o, g)

    # Layout plumbing done once in the wrapper (cheap / fused by XLA):
    x_tbd = jnp.transpose(x_btd, (1, 0, 2))                       # (T, B, D) time-major
    x_pad = jnp.pad(x_tbd, ((0, 0), (0, Bp - B), (0, 0)))         # (T, Bp, D)
    x_rows = x_pad.reshape(T * Bp, D).astype(jnp.bfloat16)        # bf16 MXU operand

    def fuse(w):  # (4D, D) torch layout -> (D, 4D) fused so that x @ fused = [xWi|xWf|xWo|xWg]
        wg = w.reshape(4, D, D)[order]                            # (4, Dout, Din)
        return jnp.transpose(wg, (2, 0, 1)).reshape(D, 4 * D)     # fused[:, k*D:(k+1)*D] = W_k^T

    wih_f = fuse(w_ih).astype(jnp.bfloat16)
    whh_f = fuse(w_hh).astype(jnp.bfloat16)
    b_f = (b_ih + b_hh).reshape(4, D)[order].reshape(1, 4 * D).astype(jnp.float32)
    wfc_row = w_fc.reshape(1, D).astype(jnp.float32)
    bfc = b_fc.reshape(1, 1).astype(jnp.float32)

    vmem = pl.BlockSpec(memory_space=pltpu.MemorySpace.VMEM)
    # Whole-array VMEM residency is fine at these sizes (few KiB << 32 MiB scoped VMEM).
    out = pl.pallas_call(
        lstm_model_kernel,
        out_shape=jax.ShapeDtypeStruct((Bp, 1), jnp.float32),
        in_specs=[vmem] * 6,
        out_specs=vmem,
    )(x_rows, wih_f, whh_f, b_f, wfc_row, bfc)
    return out[:B]


def lstm_model_reference_f32(x_btd, w_ih, w_hh, b_ih, b_hh, w_fc, b_fc):
    """Pure-f32 JAX reference mirroring torch semantics."""
    B, T, D = x_btd.shape
    h = jnp.zeros((B, D), jnp.float32)
    c = jnp.zeros((B, D), jnp.float32)

    def step(carry, x_t):
        h, c = carry
        gates = x_t @ w_ih.T + b_ih + h @ w_hh.T + b_hh
        i = jax.nn.sigmoid(gates[:, 0 * D:1 * D])
        f = jax.nn.sigmoid(gates[:, 1 * D:2 * D])
        g = jnp.tanh(gates[:, 2 * D:3 * D])
        o = jax.nn.sigmoid(gates[:, 3 * D:4 * D])
        c = f * c + i * g
        h = o * jnp.tanh(c)
        return (h, c), None

    (h, c), _ = lax.scan(step, (h, c), jnp.transpose(x_btd, (1, 0, 2)))
    return jax.nn.sigmoid(h @ w_fc.T + b_fc)


def lstm_model_reference_bf16mm(x_btd, w_ih, w_hh, b_ih, b_hh, w_fc, b_fc):
    """Reference with bf16 matmul operands / f32 accumulation, mirroring the kernel's
    numerics (for a tight correctness check)."""
    B, T, D = x_btd.shape

    def mm(a, b):
        return jnp.dot(a.astype(jnp.bfloat16), b.astype(jnp.bfloat16),
                       preferred_element_type=jnp.float32)

    b_sum = (b_ih + b_hh).astype(jnp.float32)
    h = jnp.zeros((B, D), jnp.float32)
    c = jnp.zeros((B, D), jnp.float32)

    def step(carry, x_t):
        h, c = carry
        gates = (mm(x_t, w_ih.T) + b_sum) + mm(h, w_hh.T)
        i = jax.nn.sigmoid(gates[:, 0 * D:1 * D])
        f = jax.nn.sigmoid(gates[:, 1 * D:2 * D])
        g = jnp.tanh(gates[:, 2 * D:3 * D])
        o = jax.nn.sigmoid(gates[:, 3 * D:4 * D])
        c = f * c + i * g
        h = o * jnp.tanh(c)
        return (h, c), None

    (h, c), _ = lax.scan(step, (h, c), jnp.transpose(x_btd, (1, 0, 2)))
    logits = jnp.sum(h * w_fc.reshape(1, D), axis=-1, keepdims=True) + b_fc.reshape(1, 1)
    return jax.nn.sigmoid(logits)


if __name__ == "__main__":
    B, T, D = 2, 8, 32  # batch, seq len, embedding dim (hidden_size == dim)

    key = jax.random.PRNGKey(0)
    ks = jax.random.split(key, 7)
    bound = 1.0 / jnp.sqrt(D)  # PyTorch default uniform init bound

    x = jax.random.normal(ks[0], (B, T, D), dtype=jnp.float32)
    w_ih = jax.random.uniform(ks[1], (4 * D, D), jnp.float32, -bound, bound)
    w_hh = jax.random.uniform(ks[2], (4 * D, D), jnp.float32, -bound, bound)
    b_ih = jax.random.uniform(ks[3], (4 * D,), jnp.float32, -bound, bound)
    b_hh = jax.random.uniform(ks[4], (4 * D,), jnp.float32, -bound, bound)
    w_fc = jax.random.uniform(ks[5], (1, D), jnp.float32, -bound, bound)
    b_fc = jax.random.uniform(ks[6], (1,), jnp.float32, -bound, bound)

    out = lstm_model_forward(x, w_ih, w_hh, b_ih, b_hh, w_fc, b_fc)
    out = jax.block_until_ready(out)
    assert out.shape == (B, 1)

    # Tight check vs. a reference that mirrors the kernel's bf16-MXU/f32-accum numerics.
    ref_bf16 = lstm_model_reference_bf16mm(x, w_ih, w_hh, b_ih, b_hh, w_fc, b_fc)
    assert jnp.allclose(out, ref_bf16, atol=1e-4, rtol=1e-4), (out, ref_bf16)

    # Loose sanity check vs. the pure-f32 PyTorch-equivalent reference
    # (bf16 matmul operands introduce small, bounded error).
    ref_f32 = lstm_model_reference_f32(x, w_ih, w_hh, b_ih, b_hh, w_fc, b_fc)
    assert jnp.allclose(out, ref_f32, atol=5e-2, rtol=5e-2), (out, ref_f32)

    print("KERNEL_OK")
</pallas_src>

<mosaic_0001>
module attributes {stable_mosaic.version = 11 : i64} {
  func.func @lstm_model_kernel(%arg0: memref<64x32xbf16, #tpu.memory_space<vmem>>, %arg1: memref<32x128xbf16, #tpu.memory_space<vmem>>, %arg2: memref<32x128xbf16, #tpu.memory_space<vmem>>, %arg3: memref<1x128xf32, #tpu.memory_space<vmem>>, %arg4: memref<1x32xf32, #tpu.memory_space<vmem>>, %arg5: memref<1x1xf32, #tpu.memory_space<vmem>>, %arg6: memref<8x1xf32, #tpu.memory_space<vmem>>) attributes {dimension_semantics = [], scalar_prefetch = 0 : i64, scratch_operands = 0 : i64, tpu.core_type = #tpu.core_type<tc>} {
    %c0 = arith.constant 0 : index
    %c0_0 = arith.constant 0 : index
    %0 = vector.load %arg0[%c0, %c0_0] : memref<64x32xbf16, #tpu.memory_space<vmem>>, vector<64x32xbf16>
    %c0_1 = arith.constant 0 : index
    %c0_2 = arith.constant 0 : index
    %1 = vector.load %arg1[%c0_1, %c0_2] : memref<32x128xbf16, #tpu.memory_space<vmem>>, vector<32x128xbf16>
    %cst = arith.constant dense<0.000000e+00> : vector<64x128xf32>
    %2 = tpu.matmul %0, %1, %cst {dimension_numbers = #tpu.dot_dimension_numbers<[1], [0], [0], [1], [0, 0, 1, 1], [], []>} : vector<64x32xbf16>, vector<32x128xbf16>, vector<64x128xf32> -> vector<64x128xf32>
    %c0_3 = arith.constant 0 : index
    %c0_4 = arith.constant 0 : index
    %3 = vector.load %arg3[%c0_3, %c0_4] : memref<1x128xf32, #tpu.memory_space<vmem>>, vector<1x128xf32>
    %4 = vector.broadcast %3 : vector<1x128xf32> to vector<64x128xf32>
    %5 = arith.addf %2, %4 : vector<64x128xf32>
    %c0_5 = arith.constant 0 : index
    %c0_6 = arith.constant 0 : index
    %6 = vector.load %arg2[%c0_5, %c0_6] : memref<32x128xbf16, #tpu.memory_space<vmem>>, vector<32x128xbf16>
    %cst_7 = arith.constant 0.000000e+00 : f32
    %7 = vector.broadcast %cst_7 : f32 to vector<8x32xf32>
    %cst_8 = arith.constant 0.000000e+00 : f32
    %8 = vector.broadcast %cst_8 : f32 to vector<8x32xf32>
    %9 = vector.extract_strided_slice %5 {offsets = [0, 0], sizes = [8, 128], strides = [1, 1]} : vector<64x128xf32> to vector<8x128xf32>
    %10 = arith.truncf %7 : vector<8x32xf32> to vector<8x32xbf16>
    %cst_9 = arith.constant dense<0.000000e+00> : vector<8x128xf32>
    %11 = tpu.matmul %10, %6, %cst_9 {dimension_numbers = #tpu.dot_dimension_numbers<[1], [0], [0], [1], [0, 0, 1, 1], [], []>} : vector<8x32xbf16>, vector<32x128xbf16>, vector<8x128xf32> -> vector<8x128xf32>
    %12 = arith.addf %9, %11 : vector<8x128xf32>
    %13 = vector.extract_strided_slice %12 {offsets = [0, 0], sizes = [8, 96], strides = [1, 1]} : vector<8x128xf32> to vector<8x96xf32>
    %14 = arith.negf %13 : vector<8x96xf32>
    %15 = math.exp %14 : vector<8x96xf32>
    %cst_10 = arith.constant 1.000000e+00 : f32
    %16 = vector.broadcast %cst_10 : f32 to vector<8x96xf32>
    %17 = arith.addf %16, %15 : vector<8x96xf32>
    %18 = arith.divf %16, %17 : vector<8x96xf32>
    %19 = vector.extract_strided_slice %12 {offsets = [0, 96], sizes = [8, 32], strides = [1, 1]} : vector<8x128xf32> to vector<8x32xf32>
    %20 = math.tanh %19 : vector<8x32xf32>
    %21 = vector.extract_strided_slice %18 {offsets = [0, 0], sizes = [8, 32], strides = [1, 1]} : vector<8x96xf32> to vector<8x32xf32>
    %22 = vector.extract_strided_slice %18 {offsets = [0, 32], sizes = [8, 32], strides = [1, 1]} : vector<8x96xf32> to vector<8x32xf32>
    %23 = vector.extract_strided_slice %18 {offsets = [0, 64], sizes = [8, 32], strides = [1, 1]} : vector<8x96xf32> to vector<8x32xf32>
    %24 = arith.mulf %22, %8 : vector<8x32xf32>
    %25 = arith.mulf %21, %20 : vector<8x32xf32>
    %26 = arith.addf %24, %25 : vector<8x32xf32>
    %27 = math.tanh %26 : vector<8x32xf32>
    %28 = arith.mulf %23, %27 : vector<8x32xf32>
    %29 = vector.extract_strided_slice %5 {offsets = [8, 0], sizes = [8, 128], strides = [1, 1]} : vector<64x128xf32> to vector<8x128xf32>
    %30 = arith.truncf %28 : vector<8x32xf32> to vector<8x32xbf16>
    %cst_11 = arith.constant dense<0.000000e+00> : vector<8x128xf32>
    %31 = tpu.matmul %30, %6, %cst_11 {dimension_numbers = #tpu.dot_dimension_numbers<[1], [0], [0], [1], [0, 0, 1, 1], [], []>} : vector<8x32xbf16>, vector<32x128xbf16>, vector<8x128xf32> -> vector<8x128xf32>
    %32 = arith.addf %29, %31 : vector<8x128xf32>
    %33 = vector.extract_strided_slice %32 {offsets = [0, 0], sizes = [8, 96], strides = [1, 1]} : vector<8x128xf32> to vector<8x96xf32>
    %34 = arith.negf %33 : vector<8x96xf32>
    %35 = math.exp %34 : vector<8x96xf32>
    %cst_12 = arith.constant 1.000000e+00 : f32
    %36 = vector.broadcast %cst_12 : f32 to vector<8x96xf32>
    %37 = arith.addf %36, %35 : vector<8x96xf32>
    %38 = arith.divf %36, %37 : vector<8x96xf32>
    %39 = vector.extract_strided_slice %32 {offsets = [0, 96], sizes = [8, 32], strides = [1, 1]} : vector<8x128xf32> to vector<8x32xf32>
    %40 = math.tanh %39 : vector<8x32xf32>
    %41 = vector.extract_strided_slice %38 {offsets = [0, 0], sizes = [8, 32], strides = [1, 1]} : vector<8x96xf32> to vector<8x32xf32>
    %42 = vector.extract_strided_slice %38 {offsets = [0, 32], sizes = [8, 32], strides = [1, 1]} : vector<8x96xf32> to vector<8x32xf32>
    %43 = vector.extract_strided_slice %38 {offsets = [0, 64], sizes = [8, 32], strides = [1, 1]} : vector<8x96xf32> to vector<8x32xf32>
    %44 = arith.mulf %42, %26 : vector<8x32xf32>
    %45 = arith.mulf %41, %40 : vector<8x32xf32>
    %46 = arith.addf %44, %45 : vector<8x32xf32>
    %47 = math.tanh %46 : vector<8x32xf32>
    %48 = arith.mulf %43, %47 : vector<8x32xf32>
    %49 = vector.extract_strided_slice %5 {offsets = [16, 0], sizes = [8, 128], strides = [1, 1]} : vector<64x128xf32> to vector<8x128xf32>
    %50 = arith.truncf %48 : vector<8x32xf32> to vector<8x32xbf16>
    %cst_13 = arith.constant dense<0.000000e+00> : vector<8x128xf32>
    %51 = tpu.matmul %50, %6, %cst_13 {dimension_numbers = #tpu.dot_dimension_numbers<[1], [0], [0], [1], [0, 0, 1, 1], [], []>} : vector<8x32xbf16>, vector<32x128xbf16>, vector<8x128xf32> -> vector<8x128xf32>
    %52 = arith.addf %49, %51 : vector<8x128xf32>
    %53 = vector.extract_strided_slice %52 {offsets = [0, 0], sizes = [8, 96], strides = [1, 1]} : vector<8x128xf32> to vector<8x96xf32>
    %54 = arith.negf %53 : vector<8x96xf32>
    %55 = math.exp %54 : vector<8x96xf32>
    %cst_14 = arith.constant 1.000000e+00 : f32
    %56 = vector.broadcast %cst_14 : f32 to vector<8x96xf32>
    %57 = arith.addf %56, %55 : vector<8x96xf32>
    %58 = arith.divf %56, %57 : vector<8x96xf32>
    %59 = vector.extract_strided_slice %52 {offsets = [0, 96], sizes = [8, 32], strides = [1, 1]} : vector<8x128xf32> to vector<8x32xf32>
    %60 = math.tanh %59 : vector<8x32xf32>
    %61 = vector.extract_strided_slice %58 {offsets = [0, 0], sizes = [8, 32], strides = [1, 1]} : vector<8x96xf32> to vector<8x32xf32>
    %62 = vector.extract_strided_slice %58 {offsets = [0, 32], sizes = [8, 32], strides = [1, 1]} : vector<8x96xf32> to vector<8x32xf32>
    %63 = vector.extract_strided_slice %58 {offsets = [0, 64], sizes = [8, 32], strides = [1, 1]} : vector<8x96xf32> to vector<8x32xf32>
    %64 = arith.mulf %62, %46 : vector<8x32xf32>
    %65 = arith.mulf %61, %60 : vector<8x32xf32>
    %66 = arith.addf %64, %65 : vector<8x32xf32>
    %67 = math.tanh %66 : vector<8x32xf32>
    %68 = arith.mulf %63, %67 : vector<8x32xf32>
    %69 = vector.extract_strided_slice %5 {offsets = [24, 0], sizes = [8, 128], strides = [1, 1]} : vector<64x128xf32> to vector<8x128xf32>
    %70 = arith.truncf %68 : vector<8x32xf32> to vector<8x32xbf16>
    %cst_15 = arith.constant dense<0.000000e+00> : vector<8x128xf32>
    %71 = tpu.matmul %70, %6, %cst_15 {dimension_numbers = #tpu.dot_dimension_numbers<[1], [0], [0], [1], [0, 0, 1, 1], [], []>} : vector<8x32xbf16>, vector<32x128xbf16>, vector<8x128xf32> -> vector<8x128xf32>
    %72 = arith.addf %69, %71 : vector<8x128xf32>
    %73 = vector.extract_strided_slice %72 {offsets = [0, 0], sizes = [8, 96], strides = [1, 1]} : vector<8x128xf32> to vector<8x96xf32>
    %74 = arith.negf %73 : vector<8x96xf32>
    %75 = math.exp %74 : vector<8x96xf32>
    %cst_16 = arith.constant 1.000000e+00 : f32
    %76 = vector.broadcast %cst_16 : f32 to vector<8x96xf32>
    %77 = arith.addf %76, %75 : vector<8x96xf32>
    %78 = arith.divf %76, %77 : vector<8x96xf32>
    %79 = vector.extract_strided_slice %72 {offsets = [0, 96], sizes = [8, 32], strides = [1, 1]} : vector<8x128xf32> to vector<8x32xf32>
    %80 = math.tanh %79 : vector<8x32xf32>
    %81 = vector.extract_strided_slice %78 {offsets = [0, 0], sizes = [8, 32], strides = [1, 1]} : vector<8x96xf32> to vector<8x32xf32>
    %82 = vector.extract_strided_slice %78 {offsets = [0, 32], sizes = [8, 32], strides = [1, 1]} : vector<8x96xf32> to vector<8x32xf32>
    %83 = vector.extract_strided_slice %78 {offsets = [0, 64], sizes = [8, 32], strides = [1, 1]} : vector<8x96xf32> to vector<8x32xf32>
    %84 = arith.mulf %82, %66 : vector<8x32xf32>
    %85 = arith.mulf %81, %80 : vector<8x32xf32>
    %86 = arith.addf %84, %85 : vector<8x32xf32>
    %87 = math.tanh %86 : vector<8x32xf32>
    %88 = arith.mulf %83, %87 : vector<8x32xf32>
    %89 = vector.extract_strided_slice %5 {offsets = [32, 0], sizes = [8, 128], strides = [1, 1]} : vector<64x128xf32> to vector<8x128xf32>
    %90 = arith.truncf %88 : vector<8x32xf32> to vector<8x32xbf16>
    %cst_17 = arith.constant dense<0.000000e+00> : vector<8x128xf32>
    %91 = tpu.matmul %90, %6, %cst_17 {dimension_numbers = #tpu.dot_dimension_numbers<[1], [0], [0], [1], [0, 0, 1, 1], [], []>} : vector<8x32xbf16>, vector<32x128xbf16>, vector<8x128xf32> -> vector<8x128xf32>
    %92 = arith.addf %89, %91 : vector<8x128xf32>
    %93 = vector.extract_strided_slice %92 {offsets = [0, 0], sizes = [8, 96], strides = [1, 1]} : vector<8x128xf32> to vector<8x96xf32>
    %94 = arith.negf %93 : vector<8x96xf32>
    %95 = math.exp %94 : vector<8x96xf32>
    %cst_18 = arith.constant 1.000000e+00 : f32
    %96 = vector.broadcast %cst_18 : f32 to vector<8x96xf32>
    %97 = arith.addf %96, %95 : vector<8x96xf32>
    %98 = arith.divf %96, %97 : vector<8x96xf32>
    %99 = vector.extract_strided_slice %92 {offsets = [0, 96], sizes = [8, 32], strides = [1, 1]} : vector<8x128xf32> to vector<8x32xf32>
    %100 = math.tanh %99 : vector<8x32xf32>
    %101 = vector.extract_strided_slice %98 {offsets = [0, 0], sizes = [8, 32], strides = [1, 1]} : vector<8x96xf32> to vector<8x32xf32>
    %102 = vector.extract_strided_slice %98 {offsets = [0, 32], sizes = [8, 32], strides = [1, 1]} : vector<8x96xf32> to vector<8x32xf32>
    %103 = vector.extract_strided_slice %98 {offsets = [0, 64], sizes = [8, 32], strides = [1, 1]} : vector<8x96xf32> to vector<8x32xf32>
    %104 = arith.mulf %102, %86 : vector<8x32xf32>
    %105 = arith.mulf %101, %100 : vector<8x32xf32>
    %106 = arith.addf %104, %105 : vector<8x32xf32>
    %107 = math.tanh %106 : vector<8x32xf32>
    %108 = arith.mulf %103, %107 : vector<8x32xf32>
    %109 = vector.extract_strided_slice %5 {offsets = [40, 0], sizes = [8, 128], strides = [1, 1]} : vector<64x128xf32> to vector<8x128xf32>
    %110 = arith.truncf %108 : vector<8x32xf32> to vector<8x32xbf16>
    %cst_19 = arith.constant dense<0.000000e+00> : vector<8x128xf32>
    %111 = tpu.matmul %110, %6, %cst_19 {dimension_numbers = #tpu.dot_dimension_numbers<[1], [0], [0], [1], [0, 0, 1, 1], [], []>} : vector<8x32xbf16>, vector<32x128xbf16>, vector<8x128xf32> -> vector<8x128xf32>
    %112 = arith.addf %109, %111 : vector<8x128xf32>
    %113 = vector.extract_strided_slice %112 {offsets = [0, 0], sizes = [8, 96], strides = [1, 1]} : vector<8x128xf32> to vector<8x96xf32>
    %114 = arith.negf %113 : vector<8x96xf32>
    %115 = math.exp %114 : vector<8x96xf32>
    %cst_20 = arith.constant 1.000000e+00 : f32
    %116 = vector.broadcast %cst_20 : f32 to vector<8x96xf32>
    %117 = arith.addf %116, %115 : vector<8x96xf32>
    %118 = arith.divf %116, %117 : vector<8x96xf32>
    %119 = vector.extract_strided_slice %112 {offsets = [0, 96], sizes = [8, 32], strides = [1, 1]} : vector<8x128xf32> to vector<8x32xf32>
    %120 = math.tanh %119 : vector<8x32xf32>
    %121 = vector.extract_strided_slice %118 {offsets = [0, 0], sizes = [8, 32], strides = [1, 1]} : vector<8x96xf32> to vector<8x32xf32>
    %122 = vector.extract_strided_slice %118 {offsets = [0, 32], sizes = [8, 32], strides = [1, 1]} : vector<8x96xf32> to vector<8x32xf32>
    %123 = vector.extract_strided_slice %118 {offsets = [0, 64], sizes = [8, 32], strides = [1, 1]} : vector<8x96xf32> to vector<8x32xf32>
    %124 = arith.mulf %122, %106 : vector<8x32xf32>
    %125 = arith.mulf %121, %120 : vector<8x32xf32>
    %126 = arith.addf %124, %125 : vector<8x32xf32>
    %127 = math.tanh %126 : vector<8x32xf32>
    %128 = arith.mulf %123, %127 : vector<8x32xf32>
    %129 = vector.extract_strided_slice %5 {offsets = [48, 0], sizes = [8, 128], strides = [1, 1]} : vector<64x128xf32> to vector<8x128xf32>
    %130 = arith.truncf %128 : vector<8x32xf32> to vector<8x32xbf16>
    %cst_21 = arith.constant dense<0.000000e+00> : vector<8x128xf32>
    %131 = tpu.matmul %130, %6, %cst_21 {dimension_numbers = #tpu.dot_dimension_numbers<[1], [0], [0], [1], [0, 0, 1, 1], [], []>} : vector<8x32xbf16>, vector<32x128xbf16>, vector<8x128xf32> -> vector<8x128xf32>
    %132 = arith.addf %129, %131 : vector<8x128xf32>
    %133 = vector.extract_strided_slice %132 {offsets = [0, 0], sizes = [8, 96], strides = [1, 1]} : vector<8x128xf32> to vector<8x96xf32>
    %134 = arith.negf %133 : vector<8x96xf32>
    %135 = math.exp %134 : vector<8x96xf32>
    %cst_22 = arith.constant 1.000000e+00 : f32
    %136 = vector.broadcast %cst_22 : f32 to vector<8x96xf32>
    %137 = arith.addf %136, %135 : vector<8x96xf32>
    %138 = arith.divf %136, %137 : vector<8x96xf32>
    %139 = vector.extract_strided_slice %132 {offsets = [0, 96], sizes = [8, 32], strides = [1, 1]} : vector<8x128xf32> to vector<8x32xf32>
    %140 = math.tanh %139 : vector<8x32xf32>
    %141 = vector.extract_strided_slice %138 {offsets = [0, 0], sizes = [8, 32], strides = [1, 1]} : vector<8x96xf32> to vector<8x32xf32>
    %142 = vector.extract_strided_slice %138 {offsets = [0, 32], sizes = [8, 32], strides = [1, 1]} : vector<8x96xf32> to vector<8x32xf32>
    %143 = vector.extract_strided_slice %138 {offsets = [0, 64], sizes = [8, 32], strides = [1, 1]} : vector<8x96xf32> to vector<8x32xf32>
    %144 = arith.mulf %142, %126 : vector<8x32xf32>
    %145 = arith.mulf %141, %140 : vector<8x32xf32>
    %146 = arith.addf %144, %145 : vector<8x32xf32>
    %147 = math.tanh %146 : vector<8x32xf32>
    %148 = arith.mulf %143, %147 : vector<8x32xf32>
    %149 = vector.extract_strided_slice %5 {offsets = [56, 0], sizes = [8, 128], strides = [1, 1]} : vector<64x128xf32> to vector<8x128xf32>
    %150 = arith.truncf %148 : vector<8x32xf32> to vector<8x32xbf16>
    %cst_23 = arith.constant dense<0.000000e+00> : vector<8x128xf32>
    %151 = tpu.matmul %150, %6, %cst_23 {dimension_numbers = #tpu.dot_dimension_numbers<[1], [0], [0], [1], [0, 0, 1, 1], [], []>} : vector<8x32xbf16>, vector<32x128xbf16>, vector<8x128xf32> -> vector<8x128xf32>
    %152 = arith.addf %149, %151 : vector<8x128xf32>
    %153 = vector.extract_strided_slice %152 {offsets = [0, 0], sizes = [8, 96], strides = [1, 1]} : vector<8x128xf32> to vector<8x96xf32>
    %154 = arith.negf %153 : vector<8x96xf32>
    %155 = math.exp %154 : vector<8x96xf32>
    %cst_24 = arith.constant 1.000000e+00 : f32
    %156 = vector.broadcast %cst_24 : f32 to vector<8x96xf32>
    %157 = arith.addf %156, %155 : vector<8x96xf32>
    %158 = arith.divf %156, %157 : vector<8x96xf32>
    %159 = vector.extract_strided_slice %152 {offsets = [0, 96], sizes = [8, 32], strides = [1, 1]} : vector<8x128xf32> to vector<8x32xf32>
    %160 = math.tanh %159 : vector<8x32xf32>
    %161 = vector.extract_strided_slice %158 {offsets = [0, 0], sizes = [8, 32], strides = [1, 1]} : vector<8x96xf32> to vector<8x32xf32>
    %162 = vector.extract_strided_slice %158 {offsets = [0, 32], sizes = [8, 32], strides = [1, 1]} : vector<8x96xf32> to vector<8x32xf32>
    %163 = vector.extract_strided_slice %158 {offsets = [0, 64], sizes = [8, 32], strides = [1, 1]} : vector<8x96xf32> to vector<8x32xf32>
    %164 = arith.mulf %162, %146 : vector<8x32xf32>
    %165 = arith.mulf %161, %160 : vector<8x32xf32>
    %166 = arith.addf %164, %165 : vector<8x32xf32>
    %167 = math.tanh %166 : vector<8x32xf32>
    %168 = arith.mulf %163, %167 : vector<8x32xf32>
    %c0_25 = arith.constant 0 : index
    %c0_26 = arith.constant 0 : index
    %169 = vector.load %arg4[%c0_25, %c0_26] : memref<1x32xf32, #tpu.memory_space<vmem>>, vector<1x32xf32>
    %170 = vector.broadcast %169 : vector<1x32xf32> to vector<8x32xf32>
    %171 = arith.mulf %168, %170 : vector<8x32xf32>
    %cst_27 = arith.constant dense<0.000000e+00> : vector<8xf32>
    %172 = vector.multi_reduction <add>, %171, %cst_27 [1] : vector<8x32xf32> to vector<8xf32>
    %173 = vector.shape_cast %172 : vector<8xf32> to vector<8x1xf32>
    %c0_28 = arith.constant 0 : index
    %c0_29 = arith.constant 0 : index
    %174 = vector.load %arg5[%c0_28, %c0_29] : memref<1x1xf32, #tpu.memory_space<vmem>>, vector<1x1xf32>
    %175 = vector.broadcast %174 : vector<1x1xf32> to vector<8x1xf32>
    %176 = arith.addf %173, %175 : vector<8x1xf32>
    %177 = arith.negf %176 : vector<8x1xf32>
    %178 = math.exp %177 : vector<8x1xf32>
    %cst_30 = arith.constant 1.000000e+00 : f32
    %179 = vector.broadcast %cst_30 : f32 to vector<8x1xf32>
    %180 = arith.addf %179, %178 : vector<8x1xf32>
    %181 = arith.divf %179, %180 : vector<8x1xf32>
    %c0_31 = arith.constant 0 : index
    %c0_32 = arith.constant 0 : index
    %182 = vector.load %arg6[%c0_31, %c0_32] : memref<8x1xf32, #tpu.memory_space<vmem>>, vector<8x1xf32>
    tpu.vector_store %arg6[%c0_31, %c0_32], %181 {strides = array<i32>} : memref<8x1xf32, #tpu.memory_space<vmem>>, vector<8x1xf32>,
    return
  }
}

</mosaic_0001>

<llo_original>
// kernel: tpu_custom_call.1
$region0: #{tpu_custom_call.1}
  #allocation0 [shape = 'u32[]', space=smem, size = 0x4, offset = 0x4, fixed_abs, tag = 'smem constant byte address 0x4 - core index']
  #allocation1 [shape = 'u32[72,128]{1,0:T(1,128)}', space=vmem, size = 0x9000, scoped, tag = 'internal scratch']
  #allocation2 [shape = 'f32[1,1]{1,0:T(1,128)S(1)}', space=vmem, size = 0x200, scoped, tag = 'scoped memory for tpu_custom_call.1']
  %s0 = inlined_call_operand.vmem [shape: bf16[64,32], index: 0, kind: input, shape index: {}]
  %s1 = inlined_call_operand.vmem [shape: bf16[32,128], index: 1, kind: input, shape index: {}]
  %s2 = inlined_call_operand.vmem [shape: bf16[32,128], index: 2, kind: input, shape index: {}]
  %s3 = inlined_call_operand.vmem [shape: f32[1,128], index: 3, kind: input, shape index: {}]
  %s4 = inlined_call_operand.vmem [shape: f32[1,32], index: 4, kind: input, shape index: {}]
  %s5 = inlined_call_operand.<no memory space> [shape: f32[1,1], index: 5, kind: input, shape index: {}]
  %s6 = inlined_call_operand.vmem [shape: f32[8,1], index: 6, kind: output, shape index: {}]
  %s7 = sld [smem:[#allocation0]]
  $region34: #{tpu_custom_call.1} parent=0
    _
  %s9 = ssub.s32 1, %s7
  %s10 = scalar_select 0, %s9, %s7
  %v11 = vstv %s5
  %12 = vst [vmem:[#allocation2] sm:$0x1] %v11
  // Predicated region
  $region2: #{tpu_custom_call.1} parent=0 // pred_check
    _
  $region3: #{tpu_custom_call.1} parent=0 // pred_check_branch
    %14 = sbr.rel (0) target = $region5
  $region4: #{tpu_custom_call.1} parent=0 // pred_region
    _
  $region5: #{tpu_custom_call.1} parent=0 // pred_fallthru
    _
  // Predicated region
  $region6: #{tpu_custom_call.1} parent=0 // pred_check
    _
  $region7: #{tpu_custom_call.1} parent=0 // pred_check_branch
    %16 = sbr.rel (0) target = $region9
  $region8: #{tpu_custom_call.1} parent=0 // pred_region
    _
  $region9: #{tpu_custom_call.1} parent=0 // pred_fallthru
    _
  // Predicated region
  $region10: #{tpu_custom_call.1} parent=0 // pred_check
    _
  $region11: #{tpu_custom_call.1} parent=0 // pred_check_branch
    %18 = sbr.rel (0) target = $region13
  $region12: #{tpu_custom_call.1} parent=0 // pred_region
    _
  $region13: #{tpu_custom_call.1} parent=0 // pred_fallthru
    _
  // Predicated region
  $region14: #{tpu_custom_call.1} parent=0 // pred_check
    _
  $region15: #{tpu_custom_call.1} parent=0 // pred_check_branch
    %20 = sbr.rel (0) target = $region17
  $region16: #{tpu_custom_call.1} parent=0 // pred_region
    _
  $region17: #{tpu_custom_call.1} parent=0 // pred_fallthru
    _
  // Predicated region
  $region18: #{tpu_custom_call.1} parent=0 // pred_check
    _
  $region19: #{tpu_custom_call.1} parent=0 // pred_check_branch
    %22 = sbr.rel (0) target = $region21
  $region20: #{tpu_custom_call.1} parent=0 // pred_region
    _
  $region21: #{tpu_custom_call.1} parent=0 // pred_fallthru
    _
  // Predicated region
  $region22: #{tpu_custom_call.1} parent=0 // pred_check
    _
  $region23: #{tpu_custom_call.1} parent=0 // pred_check_branch
    %24 = sbr.rel (0) target = $region25
  $region24: #{tpu_custom_call.1} parent=0 // pred_region
    _
  $region25: #{tpu_custom_call.1} parent=0 // pred_fallthru
    _
  %v26 = vld [vmem:[%s0] sm:$0xf]
  %v27 = vld [vmem:[%s0 + $0x4] sm:$0xf]
  %v28 = vld [vmem:[%s0 + $0x8] sm:$0xf]
  %v29 = vld [vmem:[%s0 + $0xc] sm:$0xf]
  %v30 = vld [vmem:[%s0 + $0x10] sm:$0xf]
  %v31 = vld [vmem:[%s0 + $0x14] sm:$0xf]
  %v32 = vld [vmem:[%s0 + $0x18] sm:$0xf]
  %v33 = vld [vmem:[%s0 + $0x1c] sm:$0xf]
  %v34 = vld [vmem:[%s1] sm:$0xf]
  %v35 = vld [vmem:[%s1 + $0x4] sm:$0xf]
  %v36 = vld [vmem:[%s1 + $0x8] sm:$0xf]
  %v37 = vld [vmem:[%s1 + $0xc] sm:$0xf]
  %v38 = vld [vmem:[%s3] sm:$0x1]
  %v40 = vperm.slane %v38, 0
  %v50 = vunpack.c.l.b16 %v26
  %v51 = vunpack.c.l.b16 %v27
  %v52 = vunpack.c.l.b16 %v28
  %v53 = vunpack.c.l.b16 %v29
  %v54 = vunpack.c.l.b16 %v30
  %v55 = vunpack.c.l.b16 %v31
  %v56 = vunpack.c.l.b16 %v32
  %v57 = vunpack.c.l.b16 %v33
  %v58 = vpack.c.b16 %v51, %v50
  %v59 = vpack.c.b16 %v53, %v52
  %v60 = vpack.c.b16 %v55, %v54
  %v61 = vpack.c.b16 %v57, %v56
  %v66 = vunpack.c.l.b16 %v34
  %v67 = vunpack.c.l.b16 %v35
  %v68 = vunpack.c.l.b16 %v36
  %v69 = vunpack.c.l.b16 %v37
  %v70 = vpack.c.b16 %v67, %v66
  %v71 = vpack.c.b16 %v69, %v68
  %vm74 = vcmask 261120
  %v76 = vsel %vm74, %v58, 0
  %v79 = vsel %vm74, %v59, 0
  %v82 = vsel %vm74, %v60, 0
  %v85 = vsel %vm74, %v61, 0
  %87 = vmatpush.bf16.msra.mxu0 0
  %88 = vmatpush.bf16.msra.mxu0 0
  %89 = vmatpush.bf16.msra.mxu0 0
  %90 = vmatpush.bf16.msra.mxu0 0
  %91 = vmatpush.bf16.msra.mxu0 0
  %92 = vmatpush.bf16.msra.mxu0 0
  %93 = vmatpush.bf16.msra.mxu0 %v71
  %94 = vmatpush.bf16.msra.mxu0 %v70
  %95 = vmatmul.bf16.gmra.mxu0 %v76
  %v96 = vpop.f32.mrf.mxu0
  %v97 = vadd.f32 %v40, %v96
  %v98 = vpop.f32.mrf.mxu0
  %v99 = vadd.f32 %v40, %v98
  %100 = vmatmul.bf16.gmra.mxu0 %v79
  %v101 = vpop.f32.mrf.mxu0
  %v102 = vadd.f32 %v40, %v101
  %v103 = vpop.f32.mrf.mxu0
  %v104 = vadd.f32 %v40, %v103
  %105 = vmatmul.bf16.gmra.mxu0 %v82
  %v106 = vpop.f32.mrf.mxu0
  %v107 = vadd.f32 %v40, %v106
  %v108 = vpop.f32.mrf.mxu0
  %v109 = vadd.f32 %v40, %v108
  %110 = vmatmul.bf16.gmra.mxu0 %v85
  %v111 = vpop.f32.mrf.mxu0
  %v112 = vadd.f32 %v40, %v111
  %v113 = vpop.f32.mrf.mxu0
  %v114 = vadd.f32 %v40, %v113
  %115 = vdwg.mxu0
  %v116 = vld [vmem:[%s2] sm:$0xf]
  %v117 = vld [vmem:[%s2 + $0x4] sm:$0xf]
  %v118 = vld [vmem:[%s2 + $0x8] sm:$0xf]
  %v119 = vld [vmem:[%s2 + $0xc] sm:$0xf]
  %v124 = vunpack.c.l.b16 %v116
  %v125 = vunpack.c.l.b16 %v117
  %v126 = vunpack.c.l.b16 %v118
  %v127 = vunpack.c.l.b16 %v119
  %v128 = vpack.c.b16 %v125, %v124
  %v129 = vpack.c.b16 %v127, %v126
  %v133 = vsel %vm74, 0, 0
  %135 = vmatpush.bf16.msra.mxu0 0
  %136 = vmatpush.bf16.msra.mxu0 0
  %137 = vmatpush.bf16.msra.mxu0 0
  %138 = vmatpush.bf16.msra.mxu0 0
  %139 = vmatpush.bf16.msra.mxu0 0
  %140 = vmatpush.bf16.msra.mxu0 0
  %141 = vmatpush.bf16.msra.mxu0 %v129
  %142 = vmatpush.bf16.msra.mxu0 %v128
  %143 = vmatmul.bf16.gmra.mxu0 %v133
  %v144 = vpop.f32.mrf.mxu0
  %v145 = vadd.f32 0.0, %v144
  %v146 = vpop.f32.mrf.mxu0
  %147 = vdwg.mxu0
  %v148 = vadd.f32 %v97, %v145
  %v149 = vxor.u32 %v148, 2147483648
  %v150 = vmul.f32 %v149, 1.442695
  %v151 = vpow.pop %v150
  %v152 = vadd.f32 %v151, 1.0
  %v153 = vrcp.pop %v152
  %v154 = vmul.f32 %v152, %v153
  %v155 = vsub.f32 1.0, %v154
  %v156 = vmul.f32 %v153, %v155
  %v157 = vadd.f32 %v153, %v156
  %vm158 = vweird.f32 %v152
  %vm159 = vweird.f32 %v153
  %vm160 = vmor %vm158, %vm159
  %v161 = vsel %vm160, %v153, %v157
  %v162 = vand.u32 2147483647, %v152
  %vm163 = vcmp.eq.f32.partialorder %v162, 8.507059e+37
  %v164 = vand.u32 %v152, 2147483648
  %v165 = vor.u32 1.1754944e-38, %v164
  %v166 = vsel %vm163, %v165, %v161
  %v167 = vmul.f32 1.0, %v166
  %v168 = vtanh.pop %v148
  %v169 = vmul.f32 %v167, 0.0
  %171 = vrot.lane.b32.xlu0 %v168, 32
  %v172 = vpop.permute.xlu0 %171
  %v174 = vmul.f32 %v167, %v172
  %176 = vrot.lane.b32.xlu0 %v174, 32
  %v177 = vpop.permute.xlu0 %176
  %v179 = vadd.f32 %v169, %v177
  %v180 = vtanh.pop %v179
  %182 = vrot.lane.b32.xlu0 %v180, 32
  %v183 = vpop.permute.xlu0 %182
  %v185 = vmul.f32 %v167, %v183
  %v186 = vpack.c.bf16 %v185, %v185
  %188 = vrot.lane.b32.xlu0 %v186, 64
  %v189 = vpop.permute.xlu0 %188
  %v191 = vsel %vm74, %v189, 0
  %193 = vmatpush.bf16.msra.mxu0 0
  %194 = vmatpush.bf16.msra.mxu0 0
  %195 = vmatpush.bf16.msra.mxu0 0
  %196 = vmatpush.bf16.msra.mxu0 0
  %197 = vmatpush.bf16.msra.mxu0 0
  %198 = vmatpush.bf16.msra.mxu0 0
  %199 = vmatpush.bf16.msra.mxu0 %v129
  %200 = vmatpush.bf16.msra.mxu0 %v128
  %201 = vmatmul.bf16.gmra.mxu0 %v191
  %v202 = vpop.f32.mrf.mxu0
  %v203 = vadd.f32 0.0, %v202
  %v204 = vpop.f32.mrf.mxu0
  %205 = vdwg.mxu0
  %v206 = vadd.f32 %v99, %v203
  %v207 = vxor.u32 %v206, 2147483648
  %v208 = vmul.f32 %v207, 1.442695
  %v209 = vpow.pop %v208
  %v210 = vadd.f32 %v209, 1.0
  %v211 = vrcp.pop %v210
  %v212 = vmul.f32 %v210, %v211
  %v213 = vsub.f32 1.0, %v212
  %v214 = vmul.f32 %v211, %v213
  %v215 = vadd.f32 %v211, %v214
  %vm216 = vweird.f32 %v210
  %vm217 = vweird.f32 %v211
  %vm218 = vmor %vm216, %vm217
  %v219 = vsel %vm218, %v211, %v215
  %v220 = vand.u32 2147483647, %v210
  %vm221 = vcmp.eq.f32.partialorder %v220, 8.507059e+37
  %v222 = vand.u32 %v210, 2147483648
  %v223 = vor.u32 1.1754944e-38, %v222
  %v224 = vsel %vm221, %v223, %v219
  %v225 = vmul.f32 1.0, %v224
  %v226 = vtanh.pop %v206
  %v227 = vmul.f32 %v225, %v179
  %229 = vrot.lane.b32.xlu0 %v226, 32
  %v230 = vpop.permute.xlu0 %229
  %v232 = vmul.f32 %v225, %v230
  %234 = vrot.lane.b32.xlu0 %v232, 32
  %v235 = vpop.permute.xlu0 %234
  %v237 = vadd.f32 %v227, %v235
  %v238 = vtanh.pop %v237
  %240 = vrot.lane.b32.xlu0 %v238, 32
  %v241 = vpop.permute.xlu0 %240
  %v243 = vmul.f32 %v225, %v241
  %v244 = vpack.c.bf16 %v243, %v243
  %246 = vrot.lane.b32.xlu0 %v244, 64
  %v247 = vpop.permute.xlu0 %246
  %v249 = vsel %vm74, %v247, 0
  %251 = vmatpush.bf16.msra.mxu0 0
  %252 = vmatpush.bf16.msra.mxu0 0
  %253 = vmatpush.bf16.msra.mxu0 0
  %254 = vmatpush.bf16.msra.mxu0 0
  %255 = vmatpush.bf16.msra.mxu0 0
  %256 = vmatpush.bf16.msra.mxu0 0
  %257 = vmatpush.bf16.msra.mxu0 %v129
  %258 = vmatpush.bf16.msra.mxu0 %v128
  %259 = vmatmul.bf16.gmra.mxu0 %v249
  %v260 = vpop.f32.mrf.mxu0
  %v261 = vadd.f32 0.0, %v260
  %v262 = vpop.f32.mrf.mxu0
  %263 = vdwg.mxu0
  %v264 = vadd.f32 %v102, %v261
  %v265 = vxor.u32 %v264, 2147483648
  %v266 = vmul.f32 %v265, 1.442695
  %v267 = vpow.pop %v266
  %v268 = vadd.f32 %v267, 1.0
  %v269 = vrcp.pop %v268
  %v270 = vmul.f32 %v268, %v269
  %v271 = vsub.f32 1.0, %v270
  %v272 = vmul.f32 %v269, %v271
  %v273 = vadd.f32 %v269, %v272
  %vm274 = vweird.f32 %v268
  %vm275 = vweird.f32 %v269
  %vm276 = vmor %vm274, %vm275
  %v277 = vsel %vm276, %v269, %v273
  %v278 = vand.u32 2147483647, %v268
  %vm279 = vcmp.eq.f32.partialorder %v278, 8.507059e+37
  %v280 = vand.u32 %v268, 2147483648
  %v281 = vor.u32 1.1754944e-38, %v280
  %v282 = vsel %vm279, %v281, %v277
  %v283 = vmul.f32 1.0, %v282
  %v284 = vtanh.pop %v264
  %v285 = vmul.f32 %v283, %v237
  %287 = vrot.lane.b32.xlu0 %v284, 32
  %v288 = vpop.permute.xlu0 %287
  %v290 = vmul.f32 %v283, %v288
  %292 = vrot.lane.b32.xlu0 %v290, 32
  %v293 = vpop.permute.xlu0 %292
  %v295 = vadd.f32 %v285, %v293
  %v296 = vtanh.pop %v295
  %298 = vrot.lane.b32.xlu0 %v296, 32
  %v299 = vpop.permute.xlu0 %298
  %v301 = vmul.f32 %v283, %v299
  %v302 = vpack.c.bf16 %v301, %v301
  %304 = vrot.lane.b32.xlu0 %v302, 64
  %v305 = vpop.permute.xlu0 %304
  %v307 = vsel %vm74, %v305, 0
  %309 = vmatpush.bf16.msra.mxu0 0
  %310 = vmatpush.bf16.msra.mxu0 0
  %311 = vmatpush.bf16.msra.mxu0 0
  %312 = vmatpush.bf16.msra.mxu0 0
  %313 = vmatpush.bf16.msra.mxu0 0
  %314 = vmatpush.bf16.msra.mxu0 0
  %315 = vmatpush.bf16.msra.mxu0 %v129
  %316 = vmatpush.bf16.msra.mxu0 %v128
  %317 = vmatmul.bf16.gmra.mxu0 %v307
  %v318 = vpop.f32.mrf.mxu0
  %v319 = vadd.f32 0.0, %v318
  %v320 = vpop.f32.mrf.mxu0
  %321 = vdwg.mxu0
  %v322 = vadd.f32 %v104, %v319
  %v323 = vxor.u32 %v322, 2147483648
  %v324 = vmul.f32 %v323, 1.442695
  %v325 = vpow.pop %v324
  %v326 = vadd.f32 %v325, 1.0
  %v327 = vrcp.pop %v326
  %v328 = vmul.f32 %v326, %v327
  %v329 = vsub.f32 1.0, %v328
  %v330 = vmul.f32 %v327, %v329
  %v331 = vadd.f32 %v327, %v330
  %vm332 = vweird.f32 %v326
  %vm333 = vweird.f32 %v327
  %vm334 = vmor %vm332, %vm333
  %v335 = vsel %vm334, %v327, %v331
  %v336 = vand.u32 2147483647, %v326
  %vm337 = vcmp.eq.f32.partialorder %v336, 8.507059e+37
  %v338 = vand.u32 %v326, 2147483648
  %v339 = vor.u32 1.1754944e-38, %v338
  %v340 = vsel %vm337, %v339, %v335
  %v341 = vmul.f32 1.0, %v340
  %v342 = vtanh.pop %v322
  %v343 = vmul.f32 %v341, %v295
  %345 = vrot.lane.b32.xlu0 %v342, 32
  %v346 = vpop.permute.xlu0 %345
  %v348 = vmul.f32 %v341, %v346
  %350 = vrot.lane.b32.xlu0 %v348, 32
  %v351 = vpop.permute.xlu0 %350
  %v353 = vadd.f32 %v343, %v351
  %v354 = vtanh.pop %v353
  %356 = vrot.lane.b32.xlu0 %v354, 32
  %v357 = vpop.permute.xlu0 %356
  %v359 = vmul.f32 %v341, %v357
  %v360 = vpack.c.bf16 %v359, %v359
  %362 = vrot.lane.b32.xlu0 %v360, 64
  %v363 = vpop.permute.xlu0 %362
  %v365 = vsel %vm74, %v363, 0
  %367 = vmatpush.bf16.msra.mxu0 0
  %368 = vmatpush.bf16.msra.mxu0 0
  %369 = vmatpush.bf16.msra.mxu0 0
  %370 = vmatpush.bf16.msra.mxu0 0
  %371 = vmatpush.bf16.msra.mxu0 0
  %372 = vmatpush.bf16.msra.mxu0 0
  %373 = vmatpush.bf16.msra.mxu0 %v129
  %374 = vmatpush.bf16.msra.mxu0 %v128
  %375 = vmatmul.bf16.gmra.mxu0 %v365
  %v376 = vpop.f32.mrf.mxu0
  %v377 = vadd.f32 0.0, %v376
  %v378 = vpop.f32.mrf.mxu0
  %379 = vdwg.mxu0
  %v380 = vadd.f32 %v107, %v377
  %v381 = vxor.u32 %v380, 2147483648
  %v382 = vmul.f32 %v381, 1.442695
  %v383 = vpow.pop %v382
  %v384 = vadd.f32 %v383, 1.0
  %v385 = vrcp.pop %v384
  %v386 = vmul.f32 %v384, %v385
  %v387 = vsub.f32 1.0, %v386
  %v388 = vmul.f32 %v385, %v387
  %v389 = vadd.f32 %v385, %v388
  %vm390 = vweird.f32 %v384
  %vm391 = vweird.f32 %v385
  %vm392 = vmor %vm390, %vm391
  %v393 = vsel %vm392, %v385, %v389
  %v394 = vand.u32 2147483647, %v384
  %vm395 = vcmp.eq.f32.partialorder %v394, 8.507059e+37
  %v396 = vand.u32 %v384, 2147483648
  %v397 = vor.u32 1.1754944e-38, %v396
  %v398 = vsel %vm395, %v397, %v393
  %v399 = vmul.f32 1.0, %v398
  %v400 = vtanh.pop %v380
  %v401 = vmul.f32 %v399, %v353
  %403 = vrot.lane.b32.xlu0 %v400, 32
  %v404 = vpop.permute.xlu0 %403
  %v406 = vmul.f32 %v399, %v404
  %408 = vrot.lane.b32.xlu0 %v406, 32
  %v409 = vpop.permute.xlu0 %408
  %v411 = vadd.f32 %v401, %v409
  %v412 = vtanh.pop %v411
  %414 = vrot.lane.b32.xlu0 %v412, 32
  %v415 = vpop.permute.xlu0 %414
  %v417 = vmul.f32 %v399, %v415
  %v418 = vpack.c.bf16 %v417, %v417
  %420 = vrot.lane.b32.xlu0 %v418, 64
  %v421 = vpop.permute.xlu0 %420
  %v423 = vsel %vm74, %v421, 0
  %425 = vmatpush.bf16.msra.mxu0 0
  %426 = vmatpush.bf16.msra.mxu0 0
  %427 = vmatpush.bf16.msra.mxu0 0
  %428 = vmatpush.bf16.msra.mxu0 0
  %429 = vmatpush.bf16.msra.mxu0 0
  %430 = vmatpush.bf16.msra.mxu0 0
  %431 = vmatpush.bf16.msra.mxu0 %v129
  %432 = vmatpush.bf16.msra.mxu0 %v128
  %433 = vmatmul.bf16.gmra.mxu0 %v423
  %v434 = vpop.f32.mrf.mxu0
  %v435 = vadd.f32 0.0, %v434
  %v436 = vpop.f32.mrf.mxu0
  %437 = vdwg.mxu0
  %v438 = vadd.f32 %v109, %v435
  %v439 = vxor.u32 %v438, 2147483648
  %v440 = vmul.f32 %v439, 1.442695
  %v441 = vpow.pop %v440
  %v442 = vadd.f32 %v441, 1.0
  %v443 = vrcp.pop %v442
  %v444 = vmul.f32 %v442, %v443
  %v445 = vsub.f32 1.0, %v444
  %v446 = vmul.f32 %v443, %v445
  %v447 = vadd.f32 %v443, %v446
  %vm448 = vweird.f32 %v442
  %vm449 = vweird.f32 %v443
  %vm450 = vmor %vm448, %vm449
  %v451 = vsel %vm450, %v443, %v447
  %v452 = vand.u32 2147483647, %v442
  %vm453 = vcmp.eq.f32.partialorder %v452, 8.507059e+37
  %v454 = vand.u32 %v442, 2147483648
  %v455 = vor.u32 1.1754944e-38, %v454
  %v456 = vsel %vm453, %v455, %v451
  %v457 = vmul.f32 1.0, %v456
  %v458 = vtanh.pop %v438
  %v459 = vmul.f32 %v457, %v411
  %461 = vrot.lane.b32.xlu0 %v458, 32
  %v462 = vpop.permute.xlu0 %461
  %v464 = vmul.f32 %v457, %v462
  %466 = vrot.lane.b32.xlu0 %v464, 32
  %v467 = vpop.permute.xlu0 %466
  %v469 = vadd.f32 %v459, %v467
  %v470 = vtanh.pop %v469
  %472 = vrot.lane.b32.xlu0 %v470, 32
  %v473 = vpop.permute.xlu0 %472
  %v475 = vmul.f32 %v457, %v473
  %v476 = vpack.c.bf16 %v475, %v475
  %478 = vrot.lane.b32.xlu0 %v476, 64
  %v479 = vpop.permute.xlu0 %478
  %v481 = vsel %vm74, %v479, 0
  %483 = vmatpush.bf16.msra.mxu0 0
  %484 = vmatpush.bf16.msra.mxu0 0
  %485 = vmatpush.bf16.msra.mxu0 0
  %486 = vmatpush.bf16.msra.mxu0 0
  %487 = vmatpush.bf16.msra.mxu0 0
  %488 = vmatpush.bf16.msra.mxu0 0
  %489 = vmatpush.bf16.msra.mxu0 %v129
  %490 = vmatpush.bf16.msra.mxu0 %v128
  %491 = vmatmul.bf16.gmra.mxu0 %v481
  %v492 = vpop.f32.mrf.mxu0
  %v493 = vadd.f32 0.0, %v492
  %v494 = vpop.f32.mrf.mxu0
  %495 = vdwg.mxu0
  %v496 = vadd.f32 %v112, %v493
  %v497 = vxor.u32 %v496, 2147483648
  %v498 = vmul.f32 %v497, 1.442695
  %v499 = vpow.pop %v498
  %v500 = vadd.f32 %v499, 1.0
  %v501 = vrcp.pop %v500
  %v502 = vmul.f32 %v500, %v501
  %v503 = vsub.f32 1.0, %v502
  %v504 = vmul.f32 %v501, %v503
  %v505 = vadd.f32 %v501, %v504
  %vm506 = vweird.f32 %v500
  %vm507 = vweird.f32 %v501
  %vm508 = vmor %vm506, %vm507
  %v509 = vsel %vm508, %v501, %v505
  %v510 = vand.u32 2147483647, %v500
  %vm511 = vcmp.eq.f32.partialorder %v510, 8.507059e+37
  %v512 = vand.u32 %v500, 2147483648
  %v513 = vor.u32 1.1754944e-38, %v512
  %v514 = vsel %vm511, %v513, %v509
  %v515 = vmul.f32 1.0, %v514
  %v516 = vtanh.pop %v496
  %v517 = vmul.f32 %v515, %v469
  %519 = vrot.lane.b32.xlu0 %v516, 32
  %v520 = vpop.permute.xlu0 %519
  %v522 = vmul.f32 %v515, %v520
  %524 = vrot.lane.b32.xlu0 %v522, 32
  %v525 = vpop.permute.xlu0 %524
  %v527 = vadd.f32 %v517, %v525
  %v528 = vtanh.pop %v527
  %530 = vrot.lane.b32.xlu0 %v528, 32
  %v531 = vpop.permute.xlu0 %530
  %v533 = vmul.f32 %v515, %v531
  %v534 = vpack.c.bf16 %v533, %v533
  %536 = vrot.lane.b32.xlu0 %v534, 64
  %v537 = vpop.permute.xlu0 %536
  %v539 = vsel %vm74, %v537, 0
  %541 = vmatpush.bf16.msra.mxu0 0
  %542 = vmatpush.bf16.msra.mxu0 0
  %543 = vmatpush.bf16.msra.mxu0 0
  %544 = vmatpush.bf16.msra.mxu0 0
  %545 = vmatpush.bf16.msra.mxu0 0
  %546 = vmatpush.bf16.msra.mxu0 0
  %547 = vmatpush.bf16.msra.mxu0 %v129
  %548 = vmatpush.bf16.msra.mxu0 %v128
  %549 = vmatmul.bf16.gmra.mxu0 %v539
  %v550 = vpop.f32.mrf.mxu0
  %v551 = vadd.f32 0.0, %v550
  %v552 = vpop.f32.mrf.mxu0
  %553 = vdwg.mxu0
  %v554 = vadd.f32 %v114, %v551
  %v555 = vxor.u32 %v554, 2147483648
  %v556 = vmul.f32 %v555, 1.442695
  %v557 = vpow.pop %v556
  %v558 = vadd.f32 %v557, 1.0
  %v559 = vrcp.pop %v558
  %v560 = vmul.f32 %v558, %v559
  %v561 = vsub.f32 1.0, %v560
  %v562 = vmul.f32 %v559, %v561
  %v563 = vadd.f32 %v559, %v562
  %vm564 = vweird.f32 %v558
  %vm565 = vweird.f32 %v559
  %vm566 = vmor %vm564, %vm565
  %v567 = vsel %vm566, %v559, %v563
  %v568 = vand.u32 2147483647, %v558
  %vm569 = vcmp.eq.f32.partialorder %v568, 8.507059e+37
  %v570 = vand.u32 %v558, 2147483648
  %v571 = vor.u32 1.1754944e-38, %v570
  %v572 = vsel %vm569, %v571, %v567
  %v573 = vmul.f32 1.0, %v572
  %v574 = vtanh.pop %v554
  %v575 = vmul.f32 %v573, %v527
  %577 = vrot.lane.b32.xlu0 %v574, 32
  %v578 = vpop.permute.xlu0 %577
  %v580 = vmul.f32 %v573, %v578
  %582 = vrot.lane.b32.xlu0 %v580, 32
  %v583 = vpop.permute.xlu0 %582
  %v585 = vadd.f32 %v575, %v583
  %v586 = vtanh.pop %v585
  %588 = vrot.lane.b32.xlu0 %v586, 32
  %v589 = vpop.permute.xlu0 %588
  %v591 = vmul.f32 %v573, %v589
  %v592 = vld [vmem:[%s4] sm:$0x1]
  %v594 = vperm.slane %v592, 0
  %595 = vrot.lane.b32.xlu0 %v594, 64
  %v596 = vpop.permute.xlu0 %595
  %v598 = vmul.f32 %v591, %v596
  %600 = vrot.lane.b32.xlu0 %v598, 64
  %v601 = vpop.permute.xlu0 %600
  %v603 = vsel %vm74, %v601, 0.0
  %604 = vadd.xlane.f32.xlu0 %v603
  %v605 = vpop.xlane.xlu0 %604
  %v606 = vld [vmem:[#allocation2] sm:$0x1]
  %v608 = vperm.slane %v606, 0
  %v610 = vadd.f32 %v605, %v608
  %v611 = vxor.u32 %v610, 2147483648
  %v612 = vmul.f32 %v611, 1.442695
  %v613 = vpow.pop %v612
  %v614 = vadd.f32 %v613, 1.0
  %v615 = vrcp.pop %v614
  %v616 = vmul.f32 %v614, %v615
  %v617 = vsub.f32 1.0, %v616
  %v618 = vmul.f32 %v615, %v617
  %v619 = vadd.f32 %v615, %v618
  %vm620 = vweird.f32 %v614
  %vm621 = vweird.f32 %v615
  %vm622 = vmor %vm620, %vm621
  %v623 = vsel %vm622, %v615, %v619
  %v624 = vand.u32 2147483647, %v614
  %vm625 = vcmp.eq.f32.partialorder %v624, 8.507059e+37
  %v626 = vand.u32 %v614, 2147483648
  %v627 = vor.u32 1.1754944e-38, %v626
  %v628 = vsel %vm625, %v627, %v623
  %v629 = vmul.f32 1.0, %v628
  %vm630 = vcmask 7168
  %631 = vst.msk [vmem:[%s6] sm:$0xff] %vm630, %v629
  // Predicated region
  $region26: #{tpu_custom_call.1} parent=0 // pred_check
    _
  $region27: #{tpu_custom_call.1} parent=0 // pred_check_branch
    %633 = sbr.rel (0) target = $region29
  $region28: #{tpu_custom_call.1} parent=0 // pred_region
    _
  $region29: #{tpu_custom_call.1} parent=0 // pred_fallthru
    _
  // Predicated region
  $region30: #{tpu_custom_call.1} parent=0 // pred_check
    _
  $region31: #{tpu_custom_call.1} parent=0 // pred_check_branch
    %635 = sbr.rel (0) target = $region33
  $region32: #{tpu_custom_call.1} parent=0 // pred_region
    _
  $region33: #{tpu_custom_call.1} parent=0 // pred_fallthru
    _

</llo_original>
